<compile_context>
chip_gen: v6e
topology: v6e:2x2x1
jax: 0.10.0
libtpu: 0.0.40
codegen_flags: <defaults>
</compile_context>

<pallas_src>
import jax
import jax.numpy as jnp
from jax.experimental import pallas as pl
from jax.experimental.pallas import tpu as pltpu

_LANE = 128
# Squeeze marker for the leading batch dim (== None on older jax versions).
_SQUEEZE = pl.Squeezed() if hasattr(pl, "Squeezed") else None

# Conservative default: double-buffered (padded) in+out tiles stay under v5e's
# 16 MiB default scoped VMEM and well under v7x's 32 MiB default / 64 MiB
# physical per TensorCore.  On v6e there is headroom to raise this (together
# with CompilerParams(vmem_limit_bytes=...)), but >=512-wide tiles already run
# at ~85% of the HBM roofline, so the extra gain is a few percent at most.
_DEFAULT_VMEM_BUDGET = 12 * 1024 * 1024


def _roundup(x, m):
    return ((x + m - 1) // m) * m


def _cdiv(a, b):
    return (a + b - 1) // b


def _sublane(itemsize):
    # Sublane packing granule: f32 -> 8, bf16 -> 16, int8/fp8 -> 32.
    return max(8, 32 // itemsize)


def _pick_tile(total, t_max, granule):
    """Largest tile <= t_max splitting `total` into near-equal granule-aligned
    pieces, so the last grid step is not a narrow partial tile."""
    if total <= t_max:
        return total
    t_max = max(granule, (t_max // granule) * granule)
    n = _cdiv(total, t_max)
    return max(granule, _roundup(_cdiv(total, n), granule))


# ----------------------------------------------------------------------------
# General path: (B, HW, C) tiles, plain 2-D (T, C) -> (C, T) transpose.
# ----------------------------------------------------------------------------
def _transpose2d_kernel(x_ref, o_ref):
    # x_ref: (T, C) tile, o_ref: (C, T) tile -- clean 2-D XLU transpose.
    o_ref[...] = x_ref[...].T


def _general_tile_hw(hw, c, itemsize, budget):
    sub = _sublane(itemsize)
    # Padded VMEM bytes per tile row, double buffered (in + out):
    #   in  (T, C): roundup(T, sub) x roundup(C, 128)
    #   out (C, T): roundup(C, sub) x roundup(T, 128)
    per_row = 2 * itemsize * (_roundup(c, _LANE) + _roundup(c, sub))
    t_max = max(sub, budget // per_row)
    return _pick_tile(hw, t_max, _LANE)


def _permute_back_general(x, budget):
    b, h, w, c = x.shape
    hw = h * w
    itemsize = jnp.dtype(x.dtype).itemsize
    t = _general_tile_hw(hw, c, itemsize, budget)
    x2 = x.reshape(b, hw, c)  # free, contiguous reshape in the wrapper
    out = pl.pallas_call(
        _transpose2d_kernel,
        out_shape=jax.ShapeDtypeStruct((b, c, hw), x.dtype),
        grid_spec=pltpu.PrefetchScalarGridSpec(
            num_scalar_prefetch=0,
            grid=(_cdiv(hw, t), b),  # spatial axis leads for v7x 2-TC sharding
            in_specs=[pl.BlockSpec((_SQUEEZE, t, c), lambda i, bi: (bi, i, 0))],
            out_specs=pl.BlockSpec((_SQUEEZE, c, t), lambda i, bi: (bi, 0, i)),
        ),
        compiler_params=pltpu.CompilerParams(
            dimension_semantics=("parallel", "parallel")),
        cost_estimate=pl.CostEstimate(
            flops=0, transcendentals=0,
            bytes_accessed=int(2 * b * hw * c * itemsize)),
    )(x2)
    return out.reshape(b, c, h, w)  # free reshape back to NCHW


# ----------------------------------------------------------------------------
# Small-C lane-packed path: (B, HW/G, G*C) lane-dense tiles, G = 128 // C.
# ----------------------------------------------------------------------------
def _make_packed_kernel(c_ch, g):
    def kernel(x_ref, o_ref, xt_ref):
        # x_ref : (T, G*C)  lane-dense input tile (G spatial positions / row)
        # o_ref : (C, T, G) channel-major output tile
        # xt_ref: (G*C, T)  VMEM scratch holding the transposed tile
        xt_ref[...] = x_ref[...].T                    # native 2-D XLU transpose
        for ch in range(c_ch):                        # static loop, c_ch <= 32
            # channel `ch` lives on sublanes ch, ch+C, ..., ch+(G-1)*C
            rows = xt_ref[pl.ds(ch, g, stride=c_ch), :]   # (G, T) strided read
            o_ref[ch, :, :] = rows.T                      # (T, G)
    return kernel


def _packed_tile_rows(r, c, itemsize, budget):
    sub = _sublane(itemsize)
    # Padded VMEM bytes per tile row (one row = 128 lanes = G spatial pos.):
    #   in  (T, 128):      T x 128                          (x2, double buf)
    #   out (C, T, G): C x T x 128   (G lanes pad to 128)   (x2, double buf)
    #   scratch (128, T):  128 x T                          (x1)
    per_row = itemsize * _LANE * (2 + 2 * c + 1)
    t_max = max(sub, budget // per_row)
    granule = _LANE if r >= _LANE else sub
    return _pick_tile(r, t_max, granule)


def _permute_back_packed(x, budget):
    b, h, w, c = x.shape
    hw = h * w
    g = _LANE // c
    r = hw // g
    itemsize = jnp.dtype(x.dtype).itemsize
    t = _packed_tile_rows(r, c, itemsize, budget)
    x_p = x.reshape(b, r, g * c)  # free, contiguous reshape
    out = pl.pallas_call(
        _make_packed_kernel(c, g),
        out_shape=jax.ShapeDtypeStruct((b, c, r, g), x.dtype),
        grid_spec=pltpu.PrefetchScalarGridSpec(
            num_scalar_prefetch=0,
            grid=(_cdiv(r, t), b),
            in_specs=[pl.BlockSpec((_SQUEEZE, t, g * c),
                                   lambda i, bi: (bi, i, 0))],
            out_specs=pl.BlockSpec((_SQUEEZE, c, t, g),
                                   lambda i, bi: (bi, 0, i, 0)),
            scratch_shapes=[pltpu.VMEM((g * c, t), x.dtype)],
        ),
        compiler_params=pltpu.CompilerParams(
            dimension_semantics=("parallel", "parallel")),
        cost_estimate=pl.CostEstimate(
            flops=0, transcendentals=0,
            bytes_accessed=int(2 * b * hw * c * itemsize)),
    )(x_p)
    return out.reshape(b, c, h, w)  # (B,C,R,G) -> (B,C,H,W) is a free view


_PACKED_PROBE = {}


def _packed_path_ok(dtype, c):
    """One-time tiny compile + numerics probe for the lane-packed path.
    Falls back to the general path if this Mosaic build rejects the
    sublane-strided ref read (or gives wrong numbers)."""
    key = (jnp.dtype(dtype).name, int(c))
    ok = _PACKED_PROBE.get(key)
    if ok is None:
        try:
            g = _LANE // c
            xp = (jnp.arange(2 * g * c, dtype=jnp.float32)
                  .reshape(1, 2, g, c).astype(dtype))
            got = _permute_back_packed(xp, _DEFAULT_VMEM_BUDGET)
            ok = bool(jnp.array_equal(got, jnp.transpose(xp, (0, 3, 1, 2))))
        except Exception:
            ok = False
        _PACKED_PROBE[key] = ok
    return ok


# ----------------------------------------------------------------------------
# Public entry point.
# ----------------------------------------------------------------------------
def permute_back(x, *, vmem_budget_bytes=_DEFAULT_VMEM_BUDGET,
                 allow_packed=True):
    """x: [B, H, W, C] -> [B, C, H, W]  (same as torch permute(0, 3, 1, 2))."""
    _, h, w, c = x.shape
    hw = h * w
    if (allow_packed and 1 <= c <= 32 and _LANE % c == 0
            and hw % (_LANE // c) == 0 and _packed_path_ok(x.dtype, c)):
        return _permute_back_packed(x, vmem_budget_bytes)
    return _permute_back_general(x, vmem_budget_bytes)


if __name__ == "__main__":
    key = jax.random.PRNGKey(0)

    # Shapes implied by the module's NHWC input: batch=2, spatial=16, channels=4.
    B, H, W, C = 2, 16, 16, 4
    x = jax.random.normal(key, (B, H, W, C), dtype=jnp.float32)
    ref = jnp.transpose(x, (0, 3, 1, 2))

    out = jax.block_until_ready(permute_back(x))
    assert out.shape == (B, C, H, W), out.shape
    assert jnp.array_equal(out, ref), "mismatch (default path)"

    # Force the general transpose path as well.
    out_g = jax.block_until_ready(permute_back(x, allow_packed=False))
    assert jnp.array_equal(out_g, ref), "mismatch (general path)"

    # Multi-tile spatial case (tiny budget forces several grid steps), C=8.
    x_big = jax.random.normal(key, (1, 64, 64, 8), dtype=jnp.float32)
    ref_big = jnp.transpose(x_big, (0, 3, 1, 2))
    out_big = jax.block_until_ready(
        permute_back(x_big, vmem_budget_bytes=256 * 1024))
    assert jnp.array_equal(out_big, ref_big), "mismatch (tiled, packed)"
    out_big_g = jax.block_until_ready(
        permute_back(x_big, vmem_budget_bytes=256 * 1024, allow_packed=False))
    assert jnp.array_equal(out_big_g, ref_big), "mismatch (tiled, general)"

    # C=3 cannot lane-pack -> general path with a non-128-divisible channel dim.
    x3 = jax.random.normal(key, (2, 16, 16, 3), dtype=jnp.float32)
    out3 = jax.block_until_ready(permute_back(x3))
    assert jnp.array_equal(out3, jnp.transpose(x3, (0, 3, 1, 2))), "mismatch (C=3)"

    # bf16 (sub-32-bit sublane granule handled by the sizing model).
    xb = x.astype(jnp.bfloat16)
    outb = jax.block_until_ready(permute_back(xb))
    assert jnp.array_equal(outb, jnp.transpose(xb, (0, 3, 1, 2))), "mismatch (bf16)"

    print("KERNEL_OK")
</pallas_src>

<mosaic_0001>
module attributes {stable_mosaic.version = 11 : i64} {
  func.func @kernel(%arg0: i32, %arg1: i32, %arg2: memref<1x2x128xf32, #tpu.memory_space<vmem>>, %arg3: memref<1x4x2x32xf32, #tpu.memory_space<vmem>>, %arg4: memref<128x2xf32, #tpu.memory_space<vmem>>) attributes {dimension_semantics = [#tpu.dimension_semantics<parallel>, #tpu.dimension_semantics<parallel>], iteration_bounds = array<i64: 1, 1>, scalar_prefetch = 0 : i64, scratch_operands = 1 : i64, tpu.core_type = #tpu.core_type<tc>, window_params = [{transform_indices = @transform_0, window_bounds = array<i64: 1, 2, 128>}, {transform_indices = @transform_1, window_bounds = array<i64: 1, 4, 2, 32>}]} {
    %c0 = arith.constant 0 : index
    %c0_0 = arith.constant 0 : index
    %c0_1 = arith.constant 0 : index
    %0 = vector.load %arg2[%c0, %c0_0, %c0_1] : memref<1x2x128xf32, #tpu.memory_space<vmem>>, vector<1x2x128xf32>
    %1 = vector.shape_cast %0 : vector<1x2x128xf32> to vector<2x128xf32>
    %2 = tpu.transpose %1, [1, 0] : vector<2x128xf32> -> vector<128x2xf32>
    %c0_2 = arith.constant 0 : index
    %c0_3 = arith.constant 0 : index
    %3 = vector.load %arg4[%c0_2, %c0_3] : memref<128x2xf32, #tpu.memory_space<vmem>>, vector<128x2xf32>
    tpu.vector_store %arg4[%c0_2, %c0_3], %2 {strides = array<i32>} : memref<128x2xf32, #tpu.memory_space<vmem>>, vector<128x2xf32>,
    %c0_4 = arith.constant 0 : index
    %c0_5 = arith.constant 0 : index
    %4 = tpu.strided_load %arg4[%c0_4, %c0_5] {strides = array<i32: 4, 1>} : memref<128x2xf32, #tpu.memory_space<vmem>>, vector<32x2xf32>
    %5 = tpu.transpose %4, [1, 0] : vector<32x2xf32> -> vector<2x32xf32>
    %c0_6 = arith.constant 0 : index
    %c0_7 = arith.constant 0 : index
    %c0_8 = arith.constant 0 : index
    %c0_9 = arith.constant 0 : index
    %6 = vector.load %arg3[%c0_6, %c0_7, %c0_8, %c0_9] : memref<1x4x2x32xf32, #tpu.memory_space<vmem>>, vector<1x1x2x32xf32>
    %7 = vector.shape_cast %6 : vector<1x1x2x32xf32> to vector<2x32xf32>
    %8 = vector.shape_cast %5 : vector<2x32xf32> to vector<1x1x2x32xf32>
    tpu.vector_store %arg3[%c0_6, %c0_7, %c0_8, %c0_9], %8 {strides = array<i32>} : memref<1x4x2x32xf32, #tpu.memory_space<vmem>>, vector<1x1x2x32xf32>,
    %c1 = arith.constant 1 : index
    %c0_10 = arith.constant 0 : index
    %9 = tpu.strided_load %arg4[%c1, %c0_10] {strides = array<i32: 4, 1>} : memref<128x2xf32, #tpu.memory_space<vmem>>, vector<32x2xf32>
    %10 = tpu.transpose %9, [1, 0] : vector<32x2xf32> -> vector<2x32xf32>
    %c0_11 = arith.constant 0 : index
    %c1_12 = arith.constant 1 : index
    %c0_13 = arith.constant 0 : index
    %c0_14 = arith.constant 0 : index
    %11 = vector.load %arg3[%c0_11, %c1_12, %c0_13, %c0_14] : memref<1x4x2x32xf32, #tpu.memory_space<vmem>>, vector<1x1x2x32xf32>
    %12 = vector.shape_cast %11 : vector<1x1x2x32xf32> to vector<2x32xf32>
    %13 = vector.shape_cast %10 : vector<2x32xf32> to vector<1x1x2x32xf32>
    tpu.vector_store %arg3[%c0_11, %c1_12, %c0_13, %c0_14], %13 {strides = array<i32>} : memref<1x4x2x32xf32, #tpu.memory_space<vmem>>, vector<1x1x2x32xf32>,
    %c2 = arith.constant 2 : index
    %c0_15 = arith.constant 0 : index
    %14 = tpu.strided_load %arg4[%c2, %c0_15] {strides = array<i32: 4, 1>} : memref<128x2xf32, #tpu.memory_space<vmem>>, vector<32x2xf32>
    %15 = tpu.transpose %14, [1, 0] : vector<32x2xf32> -> vector<2x32xf32>
    %c0_16 = arith.constant 0 : index
    %c2_17 = arith.constant 2 : index
    %c0_18 = arith.constant 0 : index
    %c0_19 = arith.constant 0 : index
    %16 = vector.load %arg3[%c0_16, %c2_17, %c0_18, %c0_19] : memref<1x4x2x32xf32, #tpu.memory_space<vmem>>, vector<1x1x2x32xf32>
    %17 = vector.shape_cast %16 : vector<1x1x2x32xf32> to vector<2x32xf32>
    %18 = vector.shape_cast %15 : vector<2x32xf32> to vector<1x1x2x32xf32>
    tpu.vector_store %arg3[%c0_16, %c2_17, %c0_18, %c0_19], %18 {strides = array<i32>} : memref<1x4x2x32xf32, #tpu.memory_space<vmem>>, vector<1x1x2x32xf32>,
    %c3 = arith.constant 3 : index
    %c0_20 = arith.constant 0 : index
    %19 = tpu.strided_load %arg4[%c3, %c0_20] {strides = array<i32: 4, 1>} : memref<128x2xf32, #tpu.memory_space<vmem>>, vector<32x2xf32>
    %20 = tpu.transpose %19, [1, 0] : vector<32x2xf32> -> vector<2x32xf32>
    %c0_21 = arith.constant 0 : index
    %c3_22 = arith.constant 3 : index
    %c0_23 = arith.constant 0 : index
    %c0_24 = arith.constant 0 : index
    %21 = vector.load %arg3[%c0_21, %c3_22, %c0_23, %c0_24] : memref<1x4x2x32xf32, #tpu.memory_space<vmem>>, vector<1x1x2x32xf32>
    %22 = vector.shape_cast %21 : vector<1x1x2x32xf32> to vector<2x32xf32>
    %23 = vector.shape_cast %20 : vector<2x32xf32> to vector<1x1x2x32xf32>
    tpu.vector_store %arg3[%c0_21, %c3_22, %c0_23, %c0_24], %23 {strides = array<i32>} : memref<1x4x2x32xf32, #tpu.memory_space<vmem>>, vector<1x1x2x32xf32>,
    return
  }
  func.func @transform_0(%arg0: i32, %arg1: i32) -> (i32, i32, i32) {
    %c0_i32 = arith.constant 0 : i32
    %c0_i32_0 = arith.constant 0 : i32
    return %arg1, %arg0, %c0_i32 : i32, i32, i32
  }
  func.func @transform_1(%arg0: i32, %arg1: i32) -> (i32, i32, i32, i32) {
    %c0_i32 = arith.constant 0 : i32
    %c0_i32_0 = arith.constant 0 : i32
    %c0_i32_1 = arith.constant 0 : i32
    return %arg1, %c0_i32, %arg0, %c0_i32_0 : i32, i32, i32, i32
  }
}

module attributes {stable_mosaic.version = 11 : i64} {
  func.func @_transpose2d_kernel(%arg0: i32, %arg1: i32, %arg2: memref<1x256x4xf32, #tpu.memory_space<vmem>>, %arg3: memref<1x4x256xf32, #tpu.memory_space<vmem>>) attributes {dimension_semantics = [#tpu.dimension_semantics<parallel>, #tpu.dimension_semantics<parallel>], iteration_bounds = array<i64: 1, 2>, scalar_prefetch = 0 : i64, scratch_operands = 0 : i64, tpu.core_type = #tpu.core_type<tc>, window_params = [{transform_indices = @transform_0, window_bounds = array<i64: 1, 256, 4>}, {transform_indices = @transform_1, window_bounds = array<i64: 1, 4, 256>}]} {
    %c0 = arith.constant 0 : index
    %c0_0 = arith.constant 0 : index
    %c0_1 = arith.constant 0 : index
    %0 = vector.load %arg2[%c0, %c0_0, %c0_1] : memref<1x256x4xf32, #tpu.memory_space<vmem>>, vector<1x256x4xf32>
    %1 = vector.shape_cast %0 : vector<1x256x4xf32> to vector<256x4xf32>
    %2 = tpu.transpose %1, [1, 0] : vector<256x4xf32> -> vector<4x256xf32>
    %c0_2 = arith.constant 0 : index
    %c0_3 = arith.constant 0 : index
    %c0_4 = arith.constant 0 : index
    %3 = vector.load %arg3[%c0_2, %c0_3, %c0_4] : memref<1x4x256xf32, #tpu.memory_space<vmem>>, vector<1x4x256xf32>
    %4 = vector.shape_cast %3 : vector<1x4x256xf32> to vector<4x256xf32>
    %5 = vector.shape_cast %2 : vector<4x256xf32> to vector<1x4x256xf32>
    tpu.vector_store %arg3[%c0_2, %c0_3, %c0_4], %5 {strides = array<i32>} : memref<1x4x256xf32, #tpu.memory_space<vmem>>, vector<1x4x256xf32>,
    return
  }
  func.func @transform_0(%arg0: i32, %arg1: i32) -> (i32, i32, i32) {
    %c0_i32 = arith.constant 0 : i32
    %c0_i32_0 = arith.constant 0 : i32
    return %arg1, %arg0, %c0_i32 : i32, i32, i32
  }
  func.func @transform_1(%arg0: i32, %arg1: i32) -> (i32, i32, i32) {
    %c0_i32 = arith.constant 0 : i32
    %c0_i32_0 = arith.constant 0 : i32
    return %arg1, %c0_i32, %arg0 : i32, i32, i32
  }
}

</mosaic_0001>

<llo_original>
// kernel: tpu_custom_call.1
$region0: #{tpu_custom_call.1}
  #allocation0 [shape = 'u32[]', space=smem, size = 0x4, offset = 0x4, fixed_abs, tag = 'smem constant byte address 0x4 - core index']
  #allocation1 [shape = 'u32[144,128]{1,0:T(1,128)}', space=vmem, size = 0x12000, scoped, tag = 'internal scratch']
  #allocation2 [shape = 'f32[128,2]{1,0:T(8,128)}', space=vmem, size = 0x10000, scoped, tag = 'scratch operand']
  %s0 = inlined_call_operand.hbm [shape: f32[1,2,128], index: 0, kind: input, shape index: {}]
  %s1 = inlined_call_operand.hbm [shape: f32[1,4,2,32], index: 1, kind: output, shape index: {}]
  %s2 = sld [smem:[#allocation0]]
  $region18: #{tpu_custom_call.1} parent=0
    _
  %s4 = ssub.s32 1, %s2
  %s5 = scalar_select 0, %s4, %s2
  $region1: #{tpu_custom_call.1} parent=0
    #allocation3 [shape = 'u8[1024]{0}', space=vmem, size = 0x400, scoped, tag = 'input window, operand 0, single buffered']
    #allocation4 [shape = 's32[1]{0}', space=sflag, size = 0x4, scoped, tag = 'scoped memory for tpu_custom_call.1']
    #allocation5 [shape = 's32[1]{0}', space=sflag, size = 0x4, scoped, tag = 'scoped memory for tpu_custom_call.1']
    #allocation6 [shape = 'u8[4096]{0}', space=vmem, size = 0x1000, scoped, tag = 'output window, operand 0, single buffered']
    %6 = vsyncpa [#allocation4], 0
    %7 = vsyncpa [#allocation5], 0
    // Predicated region
    $region2: #{tpu_custom_call.1} parent=1 // pred_check
      _
    $region3: #{tpu_custom_call.1} parent=1 // pred_check_branch
      %9 = sbr.rel (0) target = $region5
    $region4: #{tpu_custom_call.1} parent=1 // pred_region
      %s11 = ssub.s32 32, 32
      %12 = vsyncadd [#allocation4], %s11
      %s14 = sshll.u32 [#allocation3], 4
      %s15 = int_to_ptr.vmem [resolvable:$true] %s14
      %17 = dma.hbm_to_vmem [thread:$0]  %s0, 32, %s15, [#allocation4]
    $region5: #{tpu_custom_call.1} parent=1 // pred_fallthru
      _
    // Predicated region
    $region6: #{tpu_custom_call.1} parent=1 // pred_check
      _
    $region7: #{tpu_custom_call.1} parent=1 // pred_check_branch
      %19 = sbr.rel (0) target = $region9
    $region8: #{tpu_custom_call.1} parent=1 // pred_region
      %20 = dma.done [#allocation4], 32
    $region9: #{tpu_custom_call.1} parent=1 // pred_fallthru
      _
    %v21 = vld [vmem:[#allocation3] sm:$0x3]
    %22 = vxpose.xlu0.b32.start [1/16] %v21, 128
    %23 = vxpose.xlu0.b32.cont [2/16] 0.0, 128
    %24 = vxpose.xlu0.b32.cont [3/16] 0.0, 128
    %25 = vxpose.xlu0.b32.cont [4/16] 0.0, 128
    %26 = vxpose.xlu0.b32.cont [5/16] 0.0, 128
    %27 = vxpose.xlu0.b32.cont [6/16] 0.0, 128
    %28 = vxpose.xlu0.b32.cont [7/16] 0.0, 128
    %29 = vxpose.xlu0.b32.cont [8/16] 0.0, 128
    %30 = vxpose.xlu0.b32.cont [9/16] 0.0, 128
    %31 = vxpose.xlu0.b32.cont [10/16] 0.0, 128
    %32 = vxpose.xlu0.b32.cont [11/16] 0.0, 128
    %33 = vxpose.xlu0.b32.cont [12/16] 0.0, 128
    %34 = vxpose.xlu0.b32.cont [13/16] 0.0, 128
    %35 = vxpose.xlu0.b32.cont [14/16] 0.0, 128
    %36 = vxpose.xlu0.b32.cont [15/16] 0.0, 128
    %37 = vxpose.xlu0.b32.end [16/16] 0.0, 128
    %v38 = vpop.trf.xlu0
    %v39 = vpop.trf.xlu0
    %v40 = vpop.trf.xlu0
    %v41 = vpop.trf.xlu0
    %v42 = vpop.trf.xlu0
    %v43 = vpop.trf.xlu0
    %v44 = vpop.trf.xlu0
    %v45 = vpop.trf.xlu0
    %v46 = vpop.trf.xlu0
    %v47 = vpop.trf.xlu0
    %v48 = vpop.trf.xlu0
    %v49 = vpop.trf.xlu0
    %v50 = vpop.trf.xlu0
    %v51 = vpop.trf.xlu0
    %v52 = vpop.trf.xlu0
    %v53 = vpop.trf.xlu0
    %vm54 = vcmask 15360
    %55 = vst.msk [vmem:[#allocation2] sm:$0xff] %vm54, %v38
    %56 = vst.msk [vmem:[#allocation2 + $0x8] sm:$0xff] %vm54, %v39
    %57 = vst.msk [vmem:[#allocation2 + $0x10] sm:$0xff] %vm54, %v40
    %58 = vst.msk [vmem:[#allocation2 + $0x18] sm:$0xff] %vm54, %v41
    %59 = vst.msk [vmem:[#allocation2 + $0x20] sm:$0xff] %vm54, %v42
    %60 = vst.msk [vmem:[#allocation2 + $0x28] sm:$0xff] %vm54, %v43
    %61 = vst.msk [vmem:[#allocation2 + $0x30] sm:$0xff] %vm54, %v44
    %62 = vst.msk [vmem:[#allocation2 + $0x38] sm:$0xff] %vm54, %v45
    %63 = vst.msk [vmem:[#allocation2 + $0x40] sm:$0xff] %vm54, %v46
    %64 = vst.msk [vmem:[#allocation2 + $0x48] sm:$0xff] %vm54, %v47
    %65 = vst.msk [vmem:[#allocation2 + $0x50] sm:$0xff] %vm54, %v48
    %66 = vst.msk [vmem:[#allocation2 + $0x58] sm:$0xff] %vm54, %v49
    %67 = vst.msk [vmem:[#allocation2 + $0x60] sm:$0xff] %vm54, %v50
    %68 = vst.msk [vmem:[#allocation2 + $0x68] sm:$0xff] %vm54, %v51
    %69 = vst.msk [vmem:[#allocation2 + $0x70] sm:$0xff] %vm54, %v52
    %70 = vst.msk [vmem:[#allocation2 + $0x78] sm:$0xff] %vm54, %v53
    %v71 = vld [vmem:[#allocation2] ss:$4 sm:$0xff]
    %s72 = scalar_lea.vmem [#allocation2], 32
    %v73 = vld [vmem:[%s72] ss:$4 sm:$0xff]
    %s74 = scalar_lea.vmem [#allocation2], 64
    %v75 = vld [vmem:[%s74] ss:$4 sm:$0xff]
    %s76 = scalar_lea.vmem [#allocation2], 96
    %v77 = vld [vmem:[%s76] ss:$4 sm:$0xff]
    %78 = vxpose.xlu0.b32.start [1/16] %v71, 128
    %79 = vxpose.xlu0.b32.cont [2/16] %v73, 128
    %80 = vxpose.xlu0.b32.cont [3/16] %v75, 128
    %81 = vxpose.xlu0.b32.cont [4/16] %v77, 128
    %82 = vxpose.xlu0.b32.cont [5/16] 0.0, 128
    %83 = vxpose.xlu0.b32.cont [6/16] 0.0, 128
    %84 = vxpose.xlu0.b32.cont [7/16] 0.0, 128
    %85 = vxpose.xlu0.b32.cont [8/16] 0.0, 128
    %86 = vxpose.xlu0.b32.cont [9/16] 0.0, 128
    %87 = vxpose.xlu0.b32.cont [10/16] 0.0, 128
    %88 = vxpose.xlu0.b32.cont [11/16] 0.0, 128
    %89 = vxpose.xlu0.b32.cont [12/16] 0.0, 128
    %90 = vxpose.xlu0.b32.cont [13/16] 0.0, 128
    %91 = vxpose.xlu0.b32.cont [14/16] 0.0, 128
    %92 = vxpose.xlu0.b32.cont [15/16] 0.0, 128
    %93 = vxpose.xlu0.b32.end [16/16] 0.0, 128
    %v94 = vpop.trf.xlu0
    %v95 = vpop.trf.xlu0
    %v96 = vpop.trf.xlu0
    %v97 = vpop.trf.xlu0
    %v98 = vpop.trf.xlu0
    %v99 = vpop.trf.xlu0
    %v100 = vpop.trf.xlu0
    %v101 = vpop.trf.xlu0
    %v102 = vpop.trf.xlu0
    %v103 = vpop.trf.xlu0
    %v104 = vpop.trf.xlu0
    %v105 = vpop.trf.xlu0
    %v106 = vpop.trf.xlu0
    %v107 = vpop.trf.xlu0
    %v108 = vpop.trf.xlu0
    %v109 = vpop.trf.xlu0
    %vm110 = vcmask 254976
    %111 = vst.msk [vmem:[#allocation6] sm:$0x3] %vm110, %v94
    %s112 = scalar_lea.vmem [#allocation2], 1
    %v113 = vld [vmem:[%s112] ss:$4 sm:$0xff]
    %s114 = scalar_lea.vmem [#allocation2], 33
    %v115 = vld [vmem:[%s114] ss:$4 sm:$0xff]
    %s116 = scalar_lea.vmem [#allocation2], 65
    %v117 = vld [vmem:[%s116] ss:$4 sm:$0xff]
    %s118 = scalar_lea.vmem [#allocation2], 97
    %v119 = vld [vmem:[%s118] ss:$4 sm:$0xff]
    %120 = vxpose.xlu0.b32.start [1/16] %v113, 128
    %121 = vxpose.xlu0.b32.cont [2/16] %v115, 128
    %122 = vxpose.xlu0.b32.cont [3/16] %v117, 128
    %123 = vxpose.xlu0.b32.cont [4/16] %v119, 128
    %124 = vxpose.xlu0.b32.cont [5/16] 0.0, 128
    %125 = vxpose.xlu0.b32.cont [6/16] 0.0, 128
    %126 = vxpose.xlu0.b32.cont [7/16] 0.0, 128
    %127 = vxpose.xlu0.b32.cont [8/16] 0.0, 128
    %128 = vxpose.xlu0.b32.cont [9/16] 0.0, 128
    %129 = vxpose.xlu0.b32.cont [10/16] 0.0, 128
    %130 = vxpose.xlu0.b32.cont [11/16] 0.0, 128
    %131 = vxpose.xlu0.b32.cont [12/16] 0.0, 128
    %132 = vxpose.xlu0.b32.cont [13/16] 0.0, 128
    %133 = vxpose.xlu0.b32.cont [14/16] 0.0, 128
    %134 = vxpose.xlu0.b32.cont [15/16] 0.0, 128
    %135 = vxpose.xlu0.b32.end [16/16] 0.0, 128
    %v136 = vpop.trf.xlu0
    %v137 = vpop.trf.xlu0
    %v138 = vpop.trf.xlu0
    %v139 = vpop.trf.xlu0
    %v140 = vpop.trf.xlu0
    %v141 = vpop.trf.xlu0
    %v142 = vpop.trf.xlu0
    %v143 = vpop.trf.xlu0
    %v144 = vpop.trf.xlu0
    %v145 = vpop.trf.xlu0
    %v146 = vpop.trf.xlu0
    %v147 = vpop.trf.xlu0
    %v148 = vpop.trf.xlu0
    %v149 = vpop.trf.xlu0
    %v150 = vpop.trf.xlu0
    %v151 = vpop.trf.xlu0
    %s152 = scalar_lea.vmem [#allocation6], 2
    %153 = vst.msk [vmem:[%s152] sm:$0x3] %vm110, %v136
    %s154 = scalar_lea.vmem [#allocation2], 2
    %v155 = vld [vmem:[%s154] ss:$4 sm:$0xff]
    %s156 = scalar_lea.vmem [#allocation2], 34
    %v157 = vld [vmem:[%s156] ss:$4 sm:$0xff]
    %s158 = scalar_lea.vmem [#allocation2], 66
    %v159 = vld [vmem:[%s158] ss:$4 sm:$0xff]
    %s160 = scalar_lea.vmem [#allocation2], 98
    %v161 = vld [vmem:[%s160] ss:$4 sm:$0xff]
    %162 = vxpose.xlu0.b32.start [1/16] %v155, 128
    %163 = vxpose.xlu0.b32.cont [2/16] %v157, 128
    %164 = vxpose.xlu0.b32.cont [3/16] %v159, 128
    %165 = vxpose.xlu0.b32.cont [4/16] %v161, 128
    %166 = vxpose.xlu0.b32.cont [5/16] 0.0, 128
    %167 = vxpose.xlu0.b32.cont [6/16] 0.0, 128
    %168 = vxpose.xlu0.b32.cont [7/16] 0.0, 128
    %169 = vxpose.xlu0.b32.cont [8/16] 0.0, 128
    %170 = vxpose.xlu0.b32.cont [9/16] 0.0, 128
    %171 = vxpose.xlu0.b32.cont [10/16] 0.0, 128
    %172 = vxpose.xlu0.b32.cont [11/16] 0.0, 128
    %173 = vxpose.xlu0.b32.cont [12/16] 0.0, 128
    %174 = vxpose.xlu0.b32.cont [13/16] 0.0, 128
    %175 = vxpose.xlu0.b32.cont [14/16] 0.0, 128
    %176 = vxpose.xlu0.b32.cont [15/16] 0.0, 128
    %177 = vxpose.xlu0.b32.end [16/16] 0.0, 128
    %v178 = vpop.trf.xlu0
    %v179 = vpop.trf.xlu0
    %v180 = vpop.trf.xlu0
    %v181 = vpop.trf.xlu0
    %v182 = vpop.trf.xlu0
    %v183 = vpop.trf.xlu0
    %v184 = vpop.trf.xlu0
    %v185 = vpop.trf.xlu0
    %v186 = vpop.trf.xlu0
    %v187 = vpop.trf.xlu0
    %v188 = vpop.trf.xlu0
    %v189 = vpop.trf.xlu0
    %v190 = vpop.trf.xlu0
    %v191 = vpop.trf.xlu0
    %v192 = vpop.trf.xlu0
    %v193 = vpop.trf.xlu0
    %s194 = scalar_lea.vmem [#allocation6], 4
    %195 = vst.msk [vmem:[%s194] sm:$0x3] %vm110, %v178
    %s196 = scalar_lea.vmem [#allocation2], 3
    %v197 = vld [vmem:[%s196] ss:$4 sm:$0xff]
    %s198 = scalar_lea.vmem [#allocation2], 35
    %v199 = vld [vmem:[%s198] ss:$4 sm:$0xff]
    %s200 = scalar_lea.vmem [#allocation2], 67
    %v201 = vld [vmem:[%s200] ss:$4 sm:$0xff]
    %s202 = scalar_lea.vmem [#allocation2], 99
    %v203 = vld [vmem:[%s202] ss:$4 sm:$0xff]
    %204 = vxpose.xlu0.b32.start [1/16] %v197, 128
    %205 = vxpose.xlu0.b32.cont [2/16] %v199, 128
    %206 = vxpose.xlu0.b32.cont [3/16] %v201, 128
    %207 = vxpose.xlu0.b32.cont [4/16] %v203, 128
    %208 = vxpose.xlu0.b32.cont [5/16] 0.0, 128
    %209 = vxpose.xlu0.b32.cont [6/16] 0.0, 128
    %210 = vxpose.xlu0.b32.cont [7/16] 0.0, 128
    %211 = vxpose.xlu0.b32.cont [8/16] 0.0, 128
    %212 = vxpose.xlu0.b32.cont [9/16] 0.0, 128
    %213 = vxpose.xlu0.b32.cont [10/16] 0.0, 128
    %214 = vxpose.xlu0.b32.cont [11/16] 0.0, 128
    %215 = vxpose.xlu0.b32.cont [12/16] 0.0, 128
    %216 = vxpose.xlu0.b32.cont [13/16] 0.0, 128
    %217 = vxpose.xlu0.b32.cont [14/16] 0.0, 128
    %218 = vxpose.xlu0.b32.cont [15/16] 0.0, 128
    %219 = vxpose.xlu0.b32.end [16/16] 0.0, 128
    %v220 = vpop.trf.xlu0
    %v221 = vpop.trf.xlu0
    %v222 = vpop.trf.xlu0
    %v223 = vpop.trf.xlu0
    %v224 = vpop.trf.xlu0
    %v225 = vpop.trf.xlu0
    %v226 = vpop.trf.xlu0
    %v227 = vpop.trf.xlu0
    %v228 = vpop.trf.xlu0
    %v229 = vpop.trf.xlu0
    %v230 = vpop.trf.xlu0
    %v231 = vpop.trf.xlu0
    %v232 = vpop.trf.xlu0
    %v233 = vpop.trf.xlu0
    %v234 = vpop.trf.xlu0
    %v235 = vpop.trf.xlu0
    %s236 = scalar_lea.vmem [#allocation6], 6
    %237 = vst.msk [vmem:[%s236] sm:$0x3] %vm110, %v220
    // Predicated region
    $region10: #{tpu_custom_call.1} parent=1 // pred_check
      _
    $region11: #{tpu_custom_call.1} parent=1 // pred_check_branch
      %239 = sbr.rel (0) target = $region13
    $region12: #{tpu_custom_call.1} parent=1 // pred_region
      %s241 = ssub.s32 128, 128
      %242 = vsyncadd [#allocation5], %s241
      %s243 = sshll.u32 [#allocation6], 4
      %s244 = int_to_ptr.vmem [resolvable:$true] %s243
      %249 = dma.vmem_to_hbm [thread:$0]  %s244, 128, %s1, [#allocation5], 32, 32, 2
    $region13: #{tpu_custom_call.1} parent=1 // pred_fallthru
      _
    // Predicated region
    $region14: #{tpu_custom_call.1} parent=1 // pred_check
      _
    $region15: #{tpu_custom_call.1} parent=1 // pred_check_branch
      %251 = sbr.rel (0) target = $region17
    $region16: #{tpu_custom_call.1} parent=1 // pred_region
      %252 = dma.done [#allocation5], 128
    $region17: #{tpu_custom_call.1} parent=1 // pred_fallthru
      _
    %253 = vsyncpa [#allocation4], 1
    %254 = vsyncpa [#allocation5], 1

// kernel: tpu_custom_call.1
$region0: #{tpu_custom_call.1}
  #allocation0 [shape = 'u32[]', space=smem, size = 0x4, offset = 0x4, fixed_abs, tag = 'smem constant byte address 0x4 - core index']
  #allocation1 [shape = 'u32[144,128]{1,0:T(1,128)}', space=vmem, size = 0x12000, scoped, tag = 'internal scratch']
  %s0 = inlined_call_operand.vmem [shape: f32[2,256,4], index: 0, kind: input, shape index: {}]
  %s1 = inlined_call_operand.hbm [shape: f32[2,4,256], index: 1, kind: output, shape index: {}]
  %s2 = sld [smem:[#allocation0]]
  $region37: #{tpu_custom_call.1} parent=0
    _
  %s4 = ssub.s32 1, %s2
  %s5 = scalar_select 0, %s4, %s2
  $region1: #{tpu_custom_call.1} parent=0
    #allocation2 [shape = 'u8[8192]{0}', space=vmem, size = 0x2000, scoped, tag = 'output window, operand 0']
    #allocation3 [shape = 's32[2]{0}', space=sflag, size = 0x8, scoped, tag = 'scoped memory for tpu_custom_call.1']
    %6 = vsyncpa [#allocation3], 0
    %s7 = scalar_lea.sflag [#allocation3], 1
    %8 = vsyncpa %s7, 0
    loop: start=0, step=1, limit=4
    $region2: #{tpu_custom_call.1} parent=1 // loop_pre_header
      _
    $region3: #{tpu_custom_call.1} parent=1 // loop_header
      %s10 = sphi 0, %s14
      %p11 = scmp.ge.s32.totalorder %s10, 4
      %s17 = sphi 0, %s29
      %s18 = sphi 0, %s25
      %s19 = sphi 0, %s17
      %s20 = sphi 0, %s18
      %s21 = sphi 0, %s19
      %s22 = sphi 0, %s20
      %s34 = sphi 0, %s36
      %s37 = sphi 0, %s34
      %s38 = sphi 0, %s37
      %s54 = sphi 0, %s38
      %s62 = sphi 0, %s64
      %s65 = sphi 0, %s62
      %s66 = sphi 0, %s65
      %s82 = sphi 0, %s66
    $region4: #{tpu_custom_call.1} parent=1 // loop_header_branch
      %13 = sbr.rel (%p11) target = $region8
    $region5: #{tpu_custom_call.1} parent=1 // loop_body
      %s15 = ssub.s32 %s10, 1
      %s16 = ssub.s32 %s10, 2
      %s23 = sadd.s32 1, %s18
      %p24 = scmp.ge.s32.totalorder %s23, 2
      %s25 = scalar_select %p24, 0, %s23
      %s26 = sadd.s32 1, %s17
      %s27 = scalar_select %p24, %s26, %s17
      %p28 = scmp.ge.s32.totalorder %s27, 1
      %s29 = scalar_select %p28, 0, %s27
      %s30 = ssub.s32 %s18, %s25
      %s31 = ssub.s32 %s17, %s29
      %s32 = sor.u32 %s30, %s31
      %p33 = scmp.eq.s32.totalorder %s32, 0
      %s35 = sadd.s32 %s34, 1
      %s36 = scalar_select %p33, %s34, %s35
      %p39 = pneg %p33
      %p40 = scmp.eq.s32.totalorder %s10, 1
      %p41 = por %p39, %p40
      %p42 = scmp.ne.s32.totalorder %s34, %s37
      %p43 = scmp.eq.s32.totalorder %s10, 0
      %p44 = por %p42, %p43
      %p45 = scmp.ne.s32.totalorder %s34, %s37
      %p46 = scmp.eq.s32.totalorder %s15, 1
      %p47 = por %p45, %p46
      %p48 = scmp.ne.s32.totalorder %s37, %s38
      %p49 = scmp.eq.s32.totalorder %s15, 0
      %p50 = por %p48, %p49
      %p51 = scmp.ne.s32.totalorder %s37, %s38
      %p52 = scmp.eq.s32.totalorder %s16, 1
      %p53 = por %p51, %p52
      %p55 = scmp.ne.s32.totalorder %s38, %s54
      %p56 = scmp.eq.s32.totalorder %s16, 0
      %p57 = por %p55, %p56
      %s58 = ssub.s32 %s18, %s25
      %s59 = ssub.s32 %s17, %s29
      %s60 = sor.u32 %s58, %s59
      %p61 = scmp.eq.s32.totalorder %s60, 0
      %s63 = sadd.s32 %s62, 1
      %s64 = scalar_select %p61, %s62, %s63
      %p67 = pneg %p61
      %p68 = scmp.eq.s32.totalorder %s10, 1
      %p69 = por %p67, %p68
      %p70 = scmp.ne.s32.totalorder %s62, %s65
      %p71 = scmp.eq.s32.totalorder %s10, 0
      %p72 = por %p70, %p71
      %p73 = scmp.ne.s32.totalorder %s62, %s65
      %p74 = scmp.eq.s32.totalorder %s15, 1
      %p75 = por %p73, %p74
      %p76 = scmp.ne.s32.totalorder %s65, %s66
      %p77 = scmp.eq.s32.totalorder %s15, 0
      %p78 = por %p76, %p77
      %p79 = scmp.ne.s32.totalorder %s65, %s66
      %p80 = scmp.eq.s32.totalorder %s16, 1
      %p81 = por %p79, %p80
      %p83 = scmp.ne.s32.totalorder %s66, %s82
      %p84 = scmp.eq.s32.totalorder %s16, 0
      %p85 = por %p83, %p84
      %p86 = scmp.le.s32.totalorder 1, %s10
      %p87 = scmp.lt.s32.totalorder %s10, 3
      %p88 = pnand %p86, %p87
      %p89 = pneg %p88
      // Predicated region
      $region9: #{tpu_custom_call.1} parent=5 // pred_check
        _
      $region10: #{tpu_custom_call.1} parent=5 // pred_check_branch
        %91 = sbr.rel (%p88) target = $region12
      $region11: #{tpu_custom_call.1} parent=5 // pred_region
        %s92 = ssub.s32 %s10, 1
      $region12: #{tpu_custom_call.1} parent=5 // pred_fallthru
        _
      %p93 = scmp.lt.s32.totalorder %s10, 2
      // Predicated region
      $region13: #{tpu_custom_call.1} parent=5 // pred_check
        %p94 = pneg %p93
      $region14: #{tpu_custom_call.1} parent=5 // pred_check_branch
        %96 = sbr.rel (%p94) target = $region16
      $region15: #{tpu_custom_call.1} parent=5 // pred_region
        // Predicated region
        $region17: #{tpu_custom_call.1} parent=15 // pred_check
          %p97 = pneg %p44
        $region18: #{tpu_custom_call.1} parent=15 // pred_check_branch
          %99 = sbr.rel (%p97) target = $region20
        $region19: #{tpu_custom_call.1} parent=15 // pred_region
          %s100 = smul.u32 32, %s17
          %p101 = scmp.lt.s32.totalorder %s18, 1
          %s102 = scalar_select %p101, %s18, 1
          %p103 = scmp.lt.s32.totalorder %s100, 31
          %s104 = scalar_select %p103, %s100, 31
          %s105 = smul.addr %s102, 32
          %s106 = sadd.s32 %s104, %s105
          %s107 = smul.addr %s106, 8
          %s108 = scalar_lea.vmem %s0, %s107
          %s109 = smul.u32 32, %s17
        $region20: #{tpu_custom_call.1} parent=15 // pred_fallthru
          _
      $region16: #{tpu_custom_call.1} parent=5 // pred_fallthru
        _
      %p110 = scmp.le.s32.totalorder 1, %s10
      %p111 = scmp.lt.s32.totalorder %s10, 3
      %p112 = pnand %p110, %p111
      %p113 = pneg %p112
      // Predicated region
      $region21: #{tpu_custom_call.1} parent=5 // pred_check
        _
      $region22: #{tpu_custom_call.1} parent=5 // pred_check_branch
        %115 = sbr.rel (%p112) target = $region24
      $region23: #{tpu_custom_call.1} parent=5 // pred_region
        %s116 = ssub.s32 %s10, 1
        %s117 = smul.u32 32, %s19
        %p118 = scmp.lt.s32.totalorder %s20, 1
        %s119 = scalar_select %p118, %s20, 1
        %p120 = scmp.lt.s32.totalorder %s117, 31
        %s121 = scalar_select %p120, %s117, 31
        %s122 = smul.addr %s119, 32
        %s123 = sadd.s32 %s121, %s122
        %s124 = smul.addr %s123, 8
        %s125 = scalar_lea.vmem %s0, %s124
        %p126 = pneg %p50
        %p127 = pneg %p47
        %p128 = pneg %p78
        %p129 = pneg %p75
        %s130 = sand.u32 %s65, 1
        %s131 = scalar_lea.sflag [#allocation3], %s130
        %s132 = sand.u32 %s65, 1
        %s133 = smul.addr %s132, 8
        %s134 = scalar_lea.vmem [#allocation2], %s133
        %s135 = smul.u32 32, %s19
        %p136 = scmp.lt.s32.totalorder %s20, 1
        %s137 = scalar_select %p136, %s20, 1
        %p138 = scmp.lt.s32.totalorder %s135, 31
        %s139 = scalar_select %p138, %s135, 31
        %s140 = smul.addr %s137, 32
        %s141 = sadd.s32 %s139, %s140
        %s142 = smul.addr %s141, 8
        %s143 = scalar_lea.vmem %s0, %s142
        %s144 = smul.u32 32, %s19
        %s145 = smul.u32 2, %s19
        %v146 = vld [vmem:[%s143] sm:$0xff]
        %v147 = vld [vmem:[%s143 + $0x8] sm:$0xff]
        %v148 = vld [vmem:[%s143 + $0x10] sm:$0xff]
        %v149 = vld [vmem:[%s143 + $0x18] sm:$0xff]
        %v150 = vld [vmem:[%s143 + $0x20] sm:$0xff]
        %v151 = vld [vmem:[%s143 + $0x28] sm:$0xff]
        %v152 = vld [vmem:[%s143 + $0x30] sm:$0xff]
        %v153 = vld [vmem:[%s143 + $0x38] sm:$0xff]
        %v154 = vld [vmem:[%s143 + $0x40] sm:$0xff]
        %v155 = vld [vmem:[%s143 + $0x48] sm:$0xff]
        %v156 = vld [vmem:[%s143 + $0x50] sm:$0xff]
        %v157 = vld [vmem:[%s143 + $0x58] sm:$0xff]
        %v158 = vld [vmem:[%s143 + $0x60] sm:$0xff]
        %v159 = vld [vmem:[%s143 + $0x68] sm:$0xff]
        %v160 = vld [vmem:[%s143 + $0x70] sm:$0xff]
        %v161 = vld [vmem:[%s143 + $0x78] sm:$0xff]
        %v162 = vld [vmem:[%s143 + $0x80] sm:$0xff]
        %v163 = vld [vmem:[%s143 + $0x88] sm:$0xff]
        %v164 = vld [vmem:[%s143 + $0x90] sm:$0xff]
        %v165 = vld [vmem:[%s143 + $0x98] sm:$0xff]
        %v166 = vld [vmem:[%s143 + $0xa0] sm:$0xff]
        %v167 = vld [vmem:[%s143 + $0xa8] sm:$0xff]
        %v168 = vld [vmem:[%s143 + $0xb0] sm:$0xff]
        %v169 = vld [vmem:[%s143 + $0xb8] sm:$0xff]
        %v170 = vld [vmem:[%s143 + $0xc0] sm:$0xff]
        %v171 = vld [vmem:[%s143 + $0xc8] sm:$0xff]
        %v172 = vld [vmem:[%s143 + $0xd0] sm:$0xff]
        %v173 = vld [vmem:[%s143 + $0xd8] sm:$0xff]
        %v174 = vld [vmem:[%s143 + $0xe0] sm:$0xff]
        %v175 = vld [vmem:[%s143 + $0xe8] sm:$0xff]
        %v176 = vld [vmem:[%s143 + $0xf0] sm:$0xff]
        %v177 = vld [vmem:[%s143 + $0xf8] sm:$0xff]
        %178 = vxpose.xlu0.b32.start [1/16] %v146, 128
        %179 = vxpose.xlu0.b32.cont [2/16] %v147, 128
        %180 = vxpose.xlu0.b32.cont [3/16] %v148, 128
        %181 = vxpose.xlu0.b32.cont [4/16] %v149, 128
        %182 = vxpose.xlu0.b32.cont [5/16] %v150, 128
        %183 = vxpose.xlu0.b32.cont [6/16] %v151, 128
        %184 = vxpose.xlu0.b32.cont [7/16] %v152, 128
        %185 = vxpose.xlu0.b32.cont [8/16] %v153, 128
        %186 = vxpose.xlu0.b32.cont [9/16] %v154, 128
        %187 = vxpose.xlu0.b32.cont [10/16] %v155, 128
        %188 = vxpose.xlu0.b32.cont [11/16] %v156, 128
        %189 = vxpose.xlu0.b32.cont [12/16] %v157, 128
        %190 = vxpose.xlu0.b32.cont [13/16] %v158, 128
        %191 = vxpose.xlu0.b32.cont [14/16] %v159, 128
        %192 = vxpose.xlu0.b32.cont [15/16] %v160, 128
        %193 = vxpose.xlu0.b32.end [16/16] %v161, 128
        %v194 = vpop.trf.xlu0
        %v195 = vpop.trf.xlu0
        %v196 = vpop.trf.xlu0
        %v197 = vpop.trf.xlu0
        %v198 = vpop.trf.xlu0
        %v199 = vpop.trf.xlu0
        %v200 = vpop.trf.xlu0
        %v201 = vpop.trf.xlu0
        %v202 = vpop.trf.xlu0
        %v203 = vpop.trf.xlu0
        %v204 = vpop.trf.xlu0
        %v205 = vpop.trf.xlu0
        %v206 = vpop.trf.xlu0
        %v207 = vpop.trf.xlu0
        %v208 = vpop.trf.xlu0
        %v209 = vpop.trf.xlu0
        %210 = vxpose.xlu0.b32.start [1/16] %v162, 128
        %211 = vxpose.xlu0.b32.cont [2/16] %v163, 128
        %212 = vxpose.xlu0.b32.cont [3/16] %v164, 128
        %213 = vxpose.xlu0.b32.cont [4/16] %v165, 128
        %214 = vxpose.xlu0.b32.cont [5/16] %v166, 128
        %215 = vxpose.xlu0.b32.cont [6/16] %v167, 128
        %216 = vxpose.xlu0.b32.cont [7/16] %v168, 128
        %217 = vxpose.xlu0.b32.cont [8/16] %v169, 128
        %218 = vxpose.xlu0.b32.cont [9/16] %v170, 128
        %219 = vxpose.xlu0.b32.cont [10/16] %v171, 128
        %220 = vxpose.xlu0.b32.cont [11/16] %v172, 128
        %221 = vxpose.xlu0.b32.cont [12/16] %v173, 128
        %222 = vxpose.xlu0.b32.cont [13/16] %v174, 128
        %223 = vxpose.xlu0.b32.cont [14/16] %v175, 128
        %224 = vxpose.xlu0.b32.cont [15/16] %v176, 128
        %225 = vxpose.xlu0.b32.end [16/16] %v177, 128
        %v226 = vpop.trf.xlu0
        %v227 = vpop.trf.xlu0
        %v228 = vpop.trf.xlu0
        %v229 = vpop.trf.xlu0
        %v230 = vpop.trf.xlu0
        %v231 = vpop.trf.xlu0
        %v232 = vpop.trf.xlu0
        %v233 = vpop.trf.xlu0
        %v234 = vpop.trf.xlu0
        %v235 = vpop.trf.xlu0
        %v236 = vpop.trf.xlu0
        %v237 = vpop.trf.xlu0
        %v238 = vpop.trf.xlu0
        %v239 = vpop.trf.xlu0
        %v240 = vpop.trf.xlu0
        %v241 = vpop.trf.xlu0
        %v244 = vcombine.low %v194, %v226
        %246 = vst [vmem:[%s134] sm:$0xff] %v244
        %s247 = sand.u32 %s65, 1
        %s248 = scalar_lea.sflag [#allocation3], %s247
        %s249 = sand.u32 %s65, 1
        %s250 = smul.addr %s249, 8
        %s251 = scalar_lea.vmem [#allocation2], %s250
        // Predicated region
        $region25: #{tpu_custom_call.1} parent=23 // pred_check
          %p252 = pneg %p75
        $region26: #{tpu_custom_call.1} parent=23 // pred_check_branch
          %254 = sbr.rel (%p252) target = $region28
        $region27: #{tpu_custom_call.1} parent=23 // pred_region
          %s255 = smul.u32 2, %s19
          %s257 = ssub.s32 128, 128
          %258 = vsyncadd %s248, %s257
          %s259 = smul.addr %s20, 2
          %s260 = sadd.s32 %s255, %s259
          %s261 = smul.addr %s260, 64
          %s262 = scalar_lea.hbm %s1, %s261
          %s264 = sshll.u32 %s251, 4
          %s265 = int_to_ptr.vmem [resolvable:$true] %s264
          %267 = dma.vmem_to_hbm [thread:$0]  %s265, 128, %s262, %s248
        $region28: #{tpu_custom_call.1} parent=23 // pred_fallthru
          _
      $region24: #{tpu_custom_call.1} parent=5 // pred_fallthru
        _
      %p268 = scmp.le.s32.totalorder 2, %s10
      // Predicated region
      $region29: #{tpu_custom_call.1} parent=5 // pred_check
        %p269 = pneg %p268
      $region30: #{tpu_custom_call.1} parent=5 // pred_check_branch
        %271 = sbr.rel (%p269) target = $region32
      $region31: #{tpu_custom_call.1} parent=5 // pred_region
        %s272 = ssub.s32 %s10, 2
        // Predicated region
        $region33: #{tpu_custom_call.1} parent=31 // pred_check
          %p273 = pneg %p81
        $region34: #{tpu_custom_call.1} parent=31 // pred_check_branch
          %275 = sbr.rel (%p273) target = $region36
        $region35: #{tpu_custom_call.1} parent=31 // pred_region
          %s276 = sand.u32 %s66, 1
          %s277 = scalar_lea.sflag [#allocation3], %s276
          %s278 = sand.u32 %s66, 1
          %s279 = smul.addr %s278, 8
          %s280 = scalar_lea.vmem [#allocation2], %s279
          %281 = dma.done %s277, 128
        $region36: #{tpu_custom_call.1} parent=31 // pred_fallthru
          _
      $region32: #{tpu_custom_call.1} parent=5 // pred_fallthru
        _
    $region6: #{tpu_custom_call.1} parent=1 // loop_footer
      %s14 = sadd.s32 1, %s10
    $region7: #{tpu_custom_call.1} parent=1 // loop_footer_branch
      %9 = sbr.rel target = $region3
    $region8: #{tpu_custom_call.1} parent=1 // loop_exit
      _
    %282 = vsyncpa [#allocation3], 1
    %s283 = scalar_lea.sflag [#allocation3], 1
    %284 = vsyncpa %s283, 1

</llo_original>
